<compile_context>
chip_gen: v7x
topology: tpu7x:2x2x1
jax: 0.10.0
libtpu: 0.0.40
codegen_flags: <defaults>
</compile_context>

<pallas_src>
import math
import numpy as np
import jax
import jax.numpy as jnp
from jax import lax
from jax.experimental import pallas as pl
from jax.experimental.pallas import tpu as pltpu


# ---------------------------------------------------------------------------
# Kernel
# ---------------------------------------------------------------------------
def fuse_block_kernel(x_ref, w1_ref, b1_ref, w2_ref, b2_ref, o_ref):
    """Processes `bt` images per grid step in a folded (rows, W*C) layout.

    x_ref : (bt, H, W*C)   input block, W and C folded into the lane axis
    w*_ref: (3, W*C, W*C)  banded conv weights, one (W*C, W*C) matrix per kh tap
    b*_ref: (1, W*C)       bias tiled over W
    o_ref : (bt, H, W*C)   output block
    """
    bt, H, WC = x_ref.shape
    M = bt * H

    # Whole block in registers, rows = (batch, h) stacked along sublanes.
    x = x_ref[...].reshape(M, WC).astype(jnp.float32)

    # Row index *within its own image* (batch elements are stacked along rows).
    h_idx = lax.broadcasted_iota(jnp.int32, (M, WC), 0) % H
    top_mask = h_idx >= 1          # row h-1 exists inside the same image
    bot_mask = h_idx < (H - 1)     # row h+1 exists inside the same image

    def shift_rows(v, dh):
        # s[r] = v[r + dh] when row (h + dh) is inside the same image, else 0.
        # pltpu.roll (jnp.roll semantics) does the sublane shift on the XLU; the
        # mask zeroes both the H halo and any cross-batch bleed.
        if dh == 0:
            return v
        rolled = pltpu.roll(v, shift=(-dh) % M, axis=0)
        mask = bot_mask if dh > 0 else top_mask
        return jnp.where(mask, rolled, 0.0)

    def conv3x3(v, w_ref, b_ref):
        # out[h] = v[h-1] @ W[0] + v[h] @ W[1] + v[h+1] @ W[2] + bias
        acc = jnp.dot(v, w_ref[1], preferred_element_type=jnp.float32)
        acc = acc + jnp.dot(shift_rows(v, -1), w_ref[0],
                            preferred_element_type=jnp.float32)
        acc = acc + jnp.dot(shift_rows(v, +1), w_ref[2],
                            preferred_element_type=jnp.float32)
        return acc + b_ref[...]                      # (1, WC) broadcast over rows

    mid = conv3x3(x, w1_ref, b1_ref)
    mid = jnp.where(mid > 0, mid, 0.2 * mid)          # LeakyReLU(negative_slope=0.2)
    out = x + conv3x3(mid, w2_ref, b2_ref)            # residual add
    o_ref[...] = out.reshape(bt, H, WC).astype(o_ref.dtype)


# ---------------------------------------------------------------------------
# Wrapper
# ---------------------------------------------------------------------------
def conv_band_weights(w_hwio, W):
    """(3, 3, Cin, Cout) HWIO conv weights -> (3, W*Cin, W*Cout) block-banded matrices.

    band[kh][w_in*Cin + c_in, w_out*Cout + c_out] = w[kh, w_in - w_out + 1, c_in, c_out]
    when |w_in - w_out| <= 1, else 0 (this also implements the zero padding along W).
    """
    KH, KW, Cin, Cout = w_hwio.shape
    wi = jnp.arange(W)[:, None]            # w_in
    wo = jnp.arange(W)[None, :]            # w_out
    delta = wi - wo + 1                    # kw index, valid in [0, KW)
    valid = (delta >= 0) & (delta < KW)
    delta_c = jnp.clip(delta, 0, KW - 1)
    blocks = w_hwio[:, delta_c, :, :]                                   # (KH, W, W, Cin, Cout)
    blocks = jnp.where(valid[None, :, :, None, None], blocks, 0.0)
    band = jnp.transpose(blocks, (0, 1, 3, 2, 4)).reshape(KH, W * Cin, W * Cout)
    return band


def _pick_bt(B, H, WC):
    """Largest divisor of B whose block stays small in VMEM while giving enough
    rows per grid step to amortize the ~0.35us per-step overhead."""
    best = 1
    for d in range(1, B + 1):
        if B % d == 0 and d * H <= 512 and d * H * WC * 4 <= (4 << 20):
            best = d
    return best


def fuse_block_pallas(x_nhwc, w1, b1, w2, b2):
    """x_nhwc: (B, H, W, C). w1/w2: (3, 3, C, C) in (kh, kw, in, out). b1/b2: (C,)."""
    B, H, W, C = x_nhwc.shape
    WC = W * C

    x2 = x_nhwc.reshape(B, H, WC)              # fold W into the lane axis (lane-dense)
    band1 = conv_band_weights(w1, W)           # (3, WC, WC)
    band2 = conv_band_weights(w2, W)
    b1f = jnp.tile(b1, W).reshape(1, WC)
    b2f = jnp.tile(b2, W).reshape(1, WC)

    bt = _pick_bt(B, H, WC)
    grid = (B // bt,)

    out2 = pl.pallas_call(
        fuse_block_kernel,
        out_shape=jax.ShapeDtypeStruct((B, H, WC), x_nhwc.dtype),
        grid_spec=pltpu.PrefetchScalarGridSpec(
            num_scalar_prefetch=0,
            grid=grid,
            in_specs=[
                pl.BlockSpec((bt, H, WC), lambda i: (i, 0, 0)),
                pl.BlockSpec((3, WC, WC), lambda i: (0, 0, 0)),
                pl.BlockSpec((1, WC), lambda i: (0, 0)),
                pl.BlockSpec((3, WC, WC), lambda i: (0, 0, 0)),
                pl.BlockSpec((1, WC), lambda i: (0, 0)),
            ],
            out_specs=pl.BlockSpec((bt, H, WC), lambda i: (i, 0, 0)),
        ),
        compiler_params=pltpu.CompilerParams(
            dimension_semantics=("parallel",)),
    )(x2, band1, b1f, band2, b2f)
    return out2.reshape(B, H, W, C)


# ---------------------------------------------------------------------------
# Pure-JAX reference (matches PyTorch FuseBlock.forward)
# ---------------------------------------------------------------------------
def fuse_block_reference(x_nhwc, w1, b1, w2, b2):
    dn = ("NHWC", "HWIO", "NHWC")
    out = lax.conv_general_dilated(x_nhwc, w1, (1, 1), "SAME", dimension_numbers=dn) + b1
    out = jnp.where(out > 0, out, 0.2 * out)                       # LeakyReLU(0.2)
    out = lax.conv_general_dilated(out, w2, (1, 1), "SAME", dimension_numbers=dn) + b2
    return x_nhwc + out


if __name__ == "__main__":
    # Module config: a channels, kernel_size=(3,3), i != 0 init branch.
    a = 8
    kernel_size = (3, 3)
    i = 1
    B, H, W = 2, 16, 16          # W * a = 128 -> fully lane-dense layout

    key = jax.random.PRNGKey(0)
    kx, kw1, kw2 = jax.random.split(key, 3)

    # Deterministic init mirroring _initialize_weights: N(0, sigma), bias = 0.
    sigma = math.sqrt(2 / (a * a * kernel_size[0] * kernel_size[1]))
    w1 = jax.random.normal(kw1, (3, 3, a, a), jnp.float32) * sigma   # (kh, kw, in, out)
    w2 = jax.random.normal(kw2, (3, 3, a, a), jnp.float32) * sigma
    b1 = jnp.zeros((a,), jnp.float32)
    b2 = jnp.zeros((a,), jnp.float32)

    # Input built NCHW (PyTorch convention), transposed to NHWC for the kernel.
    x_nchw = jax.random.normal(kx, (B, a, H, W), jnp.float32)
    x_nhwc = jnp.transpose(x_nchw, (0, 2, 3, 1))

    out_nhwc = fuse_block_pallas(x_nhwc, w1, b1, w2, b2)
    out_nhwc = jax.block_until_ready(out_nhwc)
    out_nchw = jnp.transpose(out_nhwc, (0, 3, 1, 2))

    ref_nhwc = fuse_block_reference(x_nhwc, w1, b1, w2, b2)
    ref_nchw = jnp.transpose(ref_nhwc, (0, 3, 1, 2))

    np.testing.assert_allclose(np.asarray(out_nchw), np.asarray(ref_nchw),
                               rtol=1e-4, atol=1e-4)
    print("KERNEL_OK")
</pallas_src>

<mosaic_0001>
module attributes {stable_mosaic.version = 11 : i64} {
  func.func @fuse_block_kernel(%arg0: i32, %arg1: memref<2x16x128xf32, #tpu.memory_space<vmem>>, %arg2: memref<3x128x128xf32, #tpu.memory_space<vmem>>, %arg3: memref<1x128xf32, #tpu.memory_space<vmem>>, %arg4: memref<3x128x128xf32, #tpu.memory_space<vmem>>, %arg5: memref<1x128xf32, #tpu.memory_space<vmem>>, %arg6: memref<2x16x128xf32, #tpu.memory_space<vmem>>) attributes {dimension_semantics = [#tpu.dimension_semantics<parallel>], iteration_bounds = array<i64: 1>, scalar_prefetch = 0 : i64, scratch_operands = 0 : i64, tpu.core_type = #tpu.core_type<tc>, window_params = [{transform_indices = @transform_0, window_bounds = array<i64: 2, 16, 128>}, {pipeline_mode = #tpu.pipeline_mode<synchronous>, transform_indices = @transform_1, window_bounds = array<i64: 3, 128, 128>}, {pipeline_mode = #tpu.pipeline_mode<synchronous>, transform_indices = @transform_2, window_bounds = array<i64: 1, 128>}, {pipeline_mode = #tpu.pipeline_mode<synchronous>, transform_indices = @transform_3, window_bounds = array<i64: 3, 128, 128>}, {pipeline_mode = #tpu.pipeline_mode<synchronous>, transform_indices = @transform_4, window_bounds = array<i64: 1, 128>}, {transform_indices = @transform_5, window_bounds = array<i64: 2, 16, 128>}]} {
    %c0 = arith.constant 0 : index
    %c0_0 = arith.constant 0 : index
    %c0_1 = arith.constant 0 : index
    %0 = vector.load %arg1[%c0, %c0_0, %c0_1] : memref<2x16x128xf32, #tpu.memory_space<vmem>>, vector<2x16x128xf32>
    %1 = vector.shape_cast %0 : vector<2x16x128xf32> to vector<32x128xf32>
    %2 = tpu.iota {dimensions = array<i32: 0>} : vector<32x128xi32>
    %c16_i32 = arith.constant 16 : i32
    %c0_i32 = arith.constant 0 : i32
    %3 = arith.cmpi eq, %c16_i32, %c0_i32 : i32
    %c1_i32 = arith.constant 1 : i32
    %4 = arith.select %3, %c1_i32, %c16_i32 : i32
    %5 = vector.broadcast %4 : i32 to vector<32x128xi32>
    %6 = arith.remsi %2, %5 : vector<32x128xi32>
    %c0_i32_2 = arith.constant 0 : i32
    %7 = vector.broadcast %c0_i32_2 : i32 to vector<32x128xi32>
    %8 = arith.cmpi ne, %6, %7 : vector<32x128xi32>
    %c0_i32_3 = arith.constant 0 : i32
    %9 = vector.broadcast %c0_i32_3 : i32 to vector<32x128xi32>
    %10 = arith.cmpi slt, %6, %9 : vector<32x128xi32>
    %c0_i32_4 = arith.constant 0 : i32
    %11 = arith.cmpi slt, %4, %c0_i32_4 : i32
    %12 = vector.broadcast %11 : i1 to vector<32x128xi1>
    %13 = vector.broadcast %12 : vector<32x128xi1> to vector<32x128xi1>
    %14 = arith.xori %10, %13 : vector<32x128xi1>
    %15 = arith.andi %14, %8 : vector<32x128xi1>
    %16 = vector.broadcast %4 : i32 to vector<32x128xi32>
    %17 = arith.addi %6, %16 : vector<32x128xi32>
    %18 = arith.select %15, %17, %6 : vector<32x128xi1>, vector<32x128xi32>
    %c1_i32_5 = arith.constant 1 : i32
    %19 = vector.broadcast %c1_i32_5 : i32 to vector<32x128xi32>
    %20 = arith.cmpi sge, %18, %19 : vector<32x128xi32>
    %c15_i32 = arith.constant 15 : i32
    %21 = vector.broadcast %c15_i32 : i32 to vector<32x128xi32>
    %22 = arith.cmpi slt, %18, %21 : vector<32x128xi32>
    %c1 = arith.constant 1 : index
    %c0_6 = arith.constant 0 : index
    %c0_7 = arith.constant 0 : index
    %23 = vector.load %arg2[%c1, %c0_6, %c0_7] : memref<3x128x128xf32, #tpu.memory_space<vmem>>, vector<1x128x128xf32>
    %24 = vector.shape_cast %23 : vector<1x128x128xf32> to vector<128x128xf32>
    %cst = arith.constant dense<0.000000e+00> : vector<32x128xf32>
    %25 = tpu.matmul %1, %24, %cst {dimension_numbers = #tpu.dot_dimension_numbers<[1], [0], [0], [1], [0, 0, 1, 1], [], []>} : vector<32x128xf32>, vector<128x128xf32>, vector<32x128xf32> -> vector<32x128xf32>
    %c1_i32_8 = arith.constant 1 : i32
    %26 = tpu.dynamic_rotate %1 by %c1_i32_8 dim 0 : vector<32x128xf32>, i32 -> vector<32x128xf32>
    %cst_9 = arith.constant 0.000000e+00 : f32
    %27 = vector.broadcast %cst_9 : f32 to vector<32x128xf32>
    %28 = arith.select %20, %26, %27 : vector<32x128xi1>, vector<32x128xf32>
    %c0_10 = arith.constant 0 : index
    %c0_11 = arith.constant 0 : index
    %c0_12 = arith.constant 0 : index
    %29 = vector.load %arg2[%c0_10, %c0_11, %c0_12] : memref<3x128x128xf32, #tpu.memory_space<vmem>>, vector<1x128x128xf32>
    %30 = vector.shape_cast %29 : vector<1x128x128xf32> to vector<128x128xf32>
    %cst_13 = arith.constant dense<0.000000e+00> : vector<32x128xf32>
    %31 = tpu.matmul %28, %30, %cst_13 {dimension_numbers = #tpu.dot_dimension_numbers<[1], [0], [0], [1], [0, 0, 1, 1], [], []>} : vector<32x128xf32>, vector<128x128xf32>, vector<32x128xf32> -> vector<32x128xf32>
    %32 = arith.addf %25, %31 : vector<32x128xf32>
    %c31_i32 = arith.constant 31 : i32
    %33 = tpu.dynamic_rotate %1 by %c31_i32 dim 0 : vector<32x128xf32>, i32 -> vector<32x128xf32>
    %cst_14 = arith.constant 0.000000e+00 : f32
    %34 = vector.broadcast %cst_14 : f32 to vector<32x128xf32>
    %35 = arith.select %22, %33, %34 : vector<32x128xi1>, vector<32x128xf32>
    %c2 = arith.constant 2 : index
    %c0_15 = arith.constant 0 : index
    %c0_16 = arith.constant 0 : index
    %36 = vector.load %arg2[%c2, %c0_15, %c0_16] : memref<3x128x128xf32, #tpu.memory_space<vmem>>, vector<1x128x128xf32>
    %37 = vector.shape_cast %36 : vector<1x128x128xf32> to vector<128x128xf32>
    %cst_17 = arith.constant dense<0.000000e+00> : vector<32x128xf32>
    %38 = tpu.matmul %35, %37, %cst_17 {dimension_numbers = #tpu.dot_dimension_numbers<[1], [0], [0], [1], [0, 0, 1, 1], [], []>} : vector<32x128xf32>, vector<128x128xf32>, vector<32x128xf32> -> vector<32x128xf32>
    %39 = arith.addf %32, %38 : vector<32x128xf32>
    %c0_18 = arith.constant 0 : index
    %c0_19 = arith.constant 0 : index
    %40 = vector.load %arg3[%c0_18, %c0_19] : memref<1x128xf32, #tpu.memory_space<vmem>>, vector<1x128xf32>
    %41 = vector.broadcast %40 : vector<1x128xf32> to vector<32x128xf32>
    %42 = arith.addf %39, %41 : vector<32x128xf32>
    %cst_20 = arith.constant 0.000000e+00 : f32
    %43 = vector.broadcast %cst_20 : f32 to vector<32x128xf32>
    %44 = arith.cmpf ogt, %42, %43 : vector<32x128xf32>
    %cst_21 = arith.constant 2.000000e-01 : f32
    %45 = vector.broadcast %cst_21 : f32 to vector<32x128xf32>
    %46 = arith.mulf %45, %42 : vector<32x128xf32>
    %47 = arith.select %44, %42, %46 : vector<32x128xi1>, vector<32x128xf32>
    %c1_22 = arith.constant 1 : index
    %c0_23 = arith.constant 0 : index
    %c0_24 = arith.constant 0 : index
    %48 = vector.load %arg4[%c1_22, %c0_23, %c0_24] : memref<3x128x128xf32, #tpu.memory_space<vmem>>, vector<1x128x128xf32>
    %49 = vector.shape_cast %48 : vector<1x128x128xf32> to vector<128x128xf32>
    %cst_25 = arith.constant dense<0.000000e+00> : vector<32x128xf32>
    %50 = tpu.matmul %47, %49, %cst_25 {dimension_numbers = #tpu.dot_dimension_numbers<[1], [0], [0], [1], [0, 0, 1, 1], [], []>} : vector<32x128xf32>, vector<128x128xf32>, vector<32x128xf32> -> vector<32x128xf32>
    %c1_i32_26 = arith.constant 1 : i32
    %51 = tpu.dynamic_rotate %47 by %c1_i32_26 dim 0 : vector<32x128xf32>, i32 -> vector<32x128xf32>
    %cst_27 = arith.constant 0.000000e+00 : f32
    %52 = vector.broadcast %cst_27 : f32 to vector<32x128xf32>
    %53 = arith.select %20, %51, %52 : vector<32x128xi1>, vector<32x128xf32>
    %c0_28 = arith.constant 0 : index
    %c0_29 = arith.constant 0 : index
    %c0_30 = arith.constant 0 : index
    %54 = vector.load %arg4[%c0_28, %c0_29, %c0_30] : memref<3x128x128xf32, #tpu.memory_space<vmem>>, vector<1x128x128xf32>
    %55 = vector.shape_cast %54 : vector<1x128x128xf32> to vector<128x128xf32>
    %cst_31 = arith.constant dense<0.000000e+00> : vector<32x128xf32>
    %56 = tpu.matmul %53, %55, %cst_31 {dimension_numbers = #tpu.dot_dimension_numbers<[1], [0], [0], [1], [0, 0, 1, 1], [], []>} : vector<32x128xf32>, vector<128x128xf32>, vector<32x128xf32> -> vector<32x128xf32>
    %57 = arith.addf %50, %56 : vector<32x128xf32>
    %c31_i32_32 = arith.constant 31 : i32
    %58 = tpu.dynamic_rotate %47 by %c31_i32_32 dim 0 : vector<32x128xf32>, i32 -> vector<32x128xf32>
    %cst_33 = arith.constant 0.000000e+00 : f32
    %59 = vector.broadcast %cst_33 : f32 to vector<32x128xf32>
    %60 = arith.select %22, %58, %59 : vector<32x128xi1>, vector<32x128xf32>
    %c2_34 = arith.constant 2 : index
    %c0_35 = arith.constant 0 : index
    %c0_36 = arith.constant 0 : index
    %61 = vector.load %arg4[%c2_34, %c0_35, %c0_36] : memref<3x128x128xf32, #tpu.memory_space<vmem>>, vector<1x128x128xf32>
    %62 = vector.shape_cast %61 : vector<1x128x128xf32> to vector<128x128xf32>
    %cst_37 = arith.constant dense<0.000000e+00> : vector<32x128xf32>
    %63 = tpu.matmul %60, %62, %cst_37 {dimension_numbers = #tpu.dot_dimension_numbers<[1], [0], [0], [1], [0, 0, 1, 1], [], []>} : vector<32x128xf32>, vector<128x128xf32>, vector<32x128xf32> -> vector<32x128xf32>
    %64 = arith.addf %57, %63 : vector<32x128xf32>
    %c0_38 = arith.constant 0 : index
    %c0_39 = arith.constant 0 : index
    %65 = vector.load %arg5[%c0_38, %c0_39] : memref<1x128xf32, #tpu.memory_space<vmem>>, vector<1x128xf32>
    %66 = vector.broadcast %65 : vector<1x128xf32> to vector<32x128xf32>
    %67 = arith.addf %64, %66 : vector<32x128xf32>
    %68 = arith.addf %1, %67 : vector<32x128xf32>
    %69 = vector.shape_cast %68 : vector<32x128xf32> to vector<2x16x128xf32>
    %c0_40 = arith.constant 0 : index
    %c0_41 = arith.constant 0 : index
    %c0_42 = arith.constant 0 : index
    %70 = vector.load %arg6[%c0_40, %c0_41, %c0_42] : memref<2x16x128xf32, #tpu.memory_space<vmem>>, vector<2x16x128xf32>
    tpu.vector_store %arg6[%c0_40, %c0_41, %c0_42], %69 {strides = array<i32>} : memref<2x16x128xf32, #tpu.memory_space<vmem>>, vector<2x16x128xf32>,
    return
  }
  func.func @transform_0(%arg0: i32) -> (i32, i32, i32) {
    %c0_i32 = arith.constant 0 : i32
    %c0_i32_0 = arith.constant 0 : i32
    %c0_i32_1 = arith.constant 0 : i32
    return %arg0, %c0_i32, %c0_i32_0 : i32, i32, i32
  }
  func.func @transform_1(%arg0: i32) -> (i32, i32, i32) {
    %c0_i32 = arith.constant 0 : i32
    %c0_i32_0 = arith.constant 0 : i32
    %c0_i32_1 = arith.constant 0 : i32
    %c0_i32_2 = arith.constant 0 : i32
    return %c0_i32, %c0_i32_0, %c0_i32_1 : i32, i32, i32
  }
  func.func @transform_2(%arg0: i32) -> (i32, i32) {
    %c0_i32 = arith.constant 0 : i32
    %c0_i32_0 = arith.constant 0 : i32
    %c0_i32_1 = arith.constant 0 : i32
    return %c0_i32, %c0_i32_0 : i32, i32
  }
  func.func @transform_3(%arg0: i32) -> (i32, i32, i32) {
    %c0_i32 = arith.constant 0 : i32
    %c0_i32_0 = arith.constant 0 : i32
    %c0_i32_1 = arith.constant 0 : i32
    %c0_i32_2 = arith.constant 0 : i32
    return %c0_i32, %c0_i32_0, %c0_i32_1 : i32, i32, i32
  }
  func.func @transform_4(%arg0: i32) -> (i32, i32) {
    %c0_i32 = arith.constant 0 : i32
    %c0_i32_0 = arith.constant 0 : i32
    %c0_i32_1 = arith.constant 0 : i32
    return %c0_i32, %c0_i32_0 : i32, i32
  }
  func.func @transform_5(%arg0: i32) -> (i32, i32, i32) {
    %c0_i32 = arith.constant 0 : i32
    %c0_i32_0 = arith.constant 0 : i32
    %c0_i32_1 = arith.constant 0 : i32
    return %arg0, %c0_i32, %c0_i32_0 : i32, i32, i32
  }
}

</mosaic_0001>

<llo_original>
// kernel: tpu_custom_call.1
$region0: #{tpu_custom_call.1}
  #allocation0 [shape = 'u32[]', space=smem, size = 0x4, offset = 0x4, fixed_abs, tag = 'smem constant byte address 0x4 - core index']
  #allocation1 [shape = 'u32[144,128]{1,0:T(1,128)}', space=vmem, size = 0x12000, scoped, tag = 'internal scratch']
  %s0 = inlined_call_operand.hbm [shape: f32[2,16,128], index: 0, kind: input, shape index: {}]
  %s1 = inlined_call_operand.hbm [shape: f32[3,128,128], index: 1, kind: input, shape index: {}]
  %s2 = inlined_call_operand.vmem [shape: f32[1,128], index: 2, kind: input, shape index: {}]
  %s3 = inlined_call_operand.hbm [shape: f32[3,128,128], index: 3, kind: input, shape index: {}]
  %s4 = inlined_call_operand.vmem [shape: f32[1,128], index: 4, kind: input, shape index: {}]
  %s5 = inlined_call_operand.hbm [shape: f32[2,16,128], index: 5, kind: output, shape index: {}]
  %s6 = sld [smem:[#allocation0]]
  $region42: #{tpu_custom_call.1} parent=0
    _
  %s8 = ssub.s32 1, %s6
  %s9 = scalar_select 0, %s8, %s6
  $region1: #{tpu_custom_call.1} parent=0
    #allocation2 [shape = 'u8[16384]{0}', space=vmem, size = 0x4000, scoped, tag = 'input window, operand 0, single buffered']
    #allocation3 [shape = 's32[1]{0}', space=sflag, size = 0x4, scoped, tag = 'scoped memory for tpu_custom_call.1']
    #allocation4 [shape = 's32[1]{0}', space=sflag, size = 0x4, scoped, tag = 'scoped memory for tpu_custom_call.1']
    #allocation5 [shape = 'u8[196608]{0}', space=vmem, size = 0x30000, scoped, tag = 'input window, operand 1, single buffered']
    #allocation6 [shape = 's32[1]{0}', space=sflag, size = 0x4, scoped, tag = 'scoped memory for tpu_custom_call.1']
    #allocation7 [shape = 'u8[196608]{0}', space=vmem, size = 0x30000, scoped, tag = 'input window, operand 3, single buffered']
    #allocation8 [shape = 'u8[16384]{0}', space=vmem, size = 0x4000, scoped, tag = 'output window, operand 0, single buffered']
    %10 = vsyncpa [#allocation3], 0
    %11 = vsyncpa [#allocation6], 0
    %12 = vsyncpa [#allocation4], 0
    // Predicated region
    $region2: #{tpu_custom_call.1} parent=1 // pred_check
      _
    $region3: #{tpu_custom_call.1} parent=1 // pred_check_branch
      %14 = sbr.rel (0) target = $region5
    $region4: #{tpu_custom_call.1} parent=1 // pred_region
      %s16 = ssub.s32 512, 512
      %17 = vsyncadd [#allocation3], %s16
      %s18 = sshll.u32 [#allocation2], 4
      %s19 = int_to_ptr.vmem [resolvable:$true] %s18
      %24 = dma.hbm_to_vmem [thread:$0]  %s0, 512, %s19, [#allocation3], 128, 128, 8
    $region5: #{tpu_custom_call.1} parent=1 // pred_fallthru
      _
    // Predicated region
    $region6: #{tpu_custom_call.1} parent=1 // pred_check
      _
    $region7: #{tpu_custom_call.1} parent=1 // pred_check_branch
      %26 = sbr.rel (0) target = $region9
    $region8: #{tpu_custom_call.1} parent=1 // pred_region
      %s28 = ssub.s32 6144, 6144
      %29 = vsyncadd [#allocation6], %s28
      %s30 = sshll.u32 [#allocation5], 4
      %s31 = int_to_ptr.vmem [resolvable:$true] %s30
      %36 = dma.hbm_to_vmem [thread:$0]  %s1, 6144, %s31, [#allocation6], 128, 128, 8
    $region9: #{tpu_custom_call.1} parent=1 // pred_fallthru
      _
    // Predicated region
    $region10: #{tpu_custom_call.1} parent=1 // pred_check
      _
    $region11: #{tpu_custom_call.1} parent=1 // pred_check_branch
      %38 = sbr.rel (0) target = $region13
    $region12: #{tpu_custom_call.1} parent=1 // pred_region
      _
    $region13: #{tpu_custom_call.1} parent=1 // pred_fallthru
      _
    // Predicated region
    $region14: #{tpu_custom_call.1} parent=1 // pred_check
      _
    $region15: #{tpu_custom_call.1} parent=1 // pred_check_branch
      %40 = sbr.rel (0) target = $region17
    $region16: #{tpu_custom_call.1} parent=1 // pred_region
      %s42 = ssub.s32 6144, 6144
      %43 = vsyncadd [#allocation6], %s42
      %s44 = sshll.u32 [#allocation7], 4
      %s45 = int_to_ptr.vmem [resolvable:$true] %s44
      %50 = dma.hbm_to_vmem [thread:$0]  %s3, 6144, %s45, [#allocation6], 128, 128, 8
    $region17: #{tpu_custom_call.1} parent=1 // pred_fallthru
      _
    // Predicated region
    $region18: #{tpu_custom_call.1} parent=1 // pred_check
      _
    $region19: #{tpu_custom_call.1} parent=1 // pred_check_branch
      %52 = sbr.rel (0) target = $region21
    $region20: #{tpu_custom_call.1} parent=1 // pred_region
      _
    $region21: #{tpu_custom_call.1} parent=1 // pred_fallthru
      _
    // Predicated region
    $region22: #{tpu_custom_call.1} parent=1 // pred_check
      _
    $region23: #{tpu_custom_call.1} parent=1 // pred_check_branch
      %54 = sbr.rel (0) target = $region25
    $region24: #{tpu_custom_call.1} parent=1 // pred_region
      %55 = dma.done [#allocation3], 512
    $region25: #{tpu_custom_call.1} parent=1 // pred_fallthru
      _
    // Predicated region
    $region26: #{tpu_custom_call.1} parent=1 // pred_check
      _
    $region27: #{tpu_custom_call.1} parent=1 // pred_check_branch
      %57 = sbr.rel (0) target = $region29
    $region28: #{tpu_custom_call.1} parent=1 // pred_region
      %58 = dma.done [#allocation6], 6144
    $region29: #{tpu_custom_call.1} parent=1 // pred_fallthru
      _
    // Predicated region
    $region30: #{tpu_custom_call.1} parent=1 // pred_check
      _
    $region31: #{tpu_custom_call.1} parent=1 // pred_check_branch
      %60 = sbr.rel (0) target = $region33
    $region32: #{tpu_custom_call.1} parent=1 // pred_region
      %61 = dma.done [#allocation6], 6144
    $region33: #{tpu_custom_call.1} parent=1 // pred_fallthru
      _
    %v62 = vld [vmem:[#allocation2] sm:$0xff]
    %v63 = vld [vmem:[#allocation2 + $0x8] sm:$0xff]
    %v64 = vld [vmem:[#allocation2 + $0x10] sm:$0xff]
    %v65 = vld [vmem:[#allocation2 + $0x18] sm:$0xff]
    %v66 = vlaneseq
    %v67 = vshrl.u32 %v66, 7
    %v68 = vadd.s32 %v67, 8
    %v69 = vadd.s32 %v67, 16
    %v70 = vadd.s32 %v67, 24
    %vm71 = vcmp.lt.s32.totalorder %v67, 0
    %v72 = vsub.s32 0, %v67
    %v73 = vsel %vm71, %v72, %v67
    %v74 = vshrl.u32 %v73, 4
    %v75 = vand.u32 %v73, 15
    %v76 = vsub.s32 0, %v75
    %v77 = vsel %vm71, %v76, %v75
    %vm78 = vcmp.lt.s32.totalorder %v68, 0
    %v79 = vsub.s32 0, %v68
    %v80 = vsel %vm78, %v79, %v68
    %v81 = vshrl.u32 %v80, 4
    %v82 = vand.u32 %v80, 15
    %v83 = vsub.s32 0, %v82
    %v84 = vsel %vm78, %v83, %v82
    %vm85 = vcmp.lt.s32.totalorder %v69, 0
    %v86 = vsub.s32 0, %v69
    %v87 = vsel %vm85, %v86, %v69
    %v88 = vshrl.u32 %v87, 4
    %v89 = vand.u32 %v87, 15
    %v90 = vsub.s32 0, %v89
    %v91 = vsel %vm85, %v90, %v89
    %vm92 = vcmp.lt.s32.totalorder %v70, 0
    %v93 = vsub.s32 0, %v70
    %v94 = vsel %vm92, %v93, %v70
    %v95 = vshrl.u32 %v94, 4
    %v96 = vand.u32 %v94, 15
    %v97 = vsub.s32 0, %v96
    %v98 = vsel %vm92, %v97, %v96
    %vm99 = vcmp.ne.s32.totalorder %v77, 0
    %vm100 = vcmp.ne.s32.totalorder %v84, 0
    %vm101 = vcmp.ne.s32.totalorder %v91, 0
    %vm102 = vcmp.ne.s32.totalorder %v98, 0
    %vm103 = vcmp.lt.s32.totalorder %v77, 0
    %vm104 = vcmp.lt.s32.totalorder %v84, 0
    %vm105 = vcmp.lt.s32.totalorder %v91, 0
    %vm106 = vcmp.lt.s32.totalorder %v98, 0
    %vm107 = vmand %vm103, %vm99
    %vm108 = vmand %vm104, %vm100
    %vm109 = vmand %vm105, %vm101
    %vm110 = vmand %vm106, %vm102
    %v111 = vadd.s32 %v77, 16
    %v112 = vadd.s32 %v84, 16
    %v113 = vadd.s32 %v91, 16
    %v114 = vadd.s32 %v98, 16
    %v115 = vsel %vm107, %v111, %v77
    %v116 = vsel %vm108, %v112, %v84
    %v117 = vsel %vm109, %v113, %v91
    %v118 = vsel %vm110, %v114, %v98
    %vm119 = vcmp.ge.s32.totalorder %v115, 1
    %vm120 = vcmp.ge.s32.totalorder %v116, 1
    %vm121 = vcmp.ge.s32.totalorder %v117, 1
    %vm122 = vcmp.ge.s32.totalorder %v118, 1
    %vm123 = vcmp.lt.s32.totalorder %v115, 15
    %vm124 = vcmp.lt.s32.totalorder %v116, 15
    %vm125 = vcmp.lt.s32.totalorder %v117, 15
    %vm126 = vcmp.lt.s32.totalorder %v118, 15
    %s127 = scalar_lea.vmem [#allocation5], 128
    %v128 = vld [vmem:[%s127] sm:$0xff]
    %v129 = vld [vmem:[%s127 + $0x8] sm:$0xff]
    %v130 = vld [vmem:[%s127 + $0x10] sm:$0xff]
    %v131 = vld [vmem:[%s127 + $0x18] sm:$0xff]
    %v132 = vld [vmem:[%s127 + $0x20] sm:$0xff]
    %v133 = vld [vmem:[%s127 + $0x28] sm:$0xff]
    %v134 = vld [vmem:[%s127 + $0x30] sm:$0xff]
    %v135 = vld [vmem:[%s127 + $0x38] sm:$0xff]
    %v136 = vld [vmem:[%s127 + $0x40] sm:$0xff]
    %v137 = vld [vmem:[%s127 + $0x48] sm:$0xff]
    %v138 = vld [vmem:[%s127 + $0x50] sm:$0xff]
    %v139 = vld [vmem:[%s127 + $0x58] sm:$0xff]
    %v140 = vld [vmem:[%s127 + $0x60] sm:$0xff]
    %v141 = vld [vmem:[%s127 + $0x68] sm:$0xff]
    %v142 = vld [vmem:[%s127 + $0x70] sm:$0xff]
    %v143 = vld [vmem:[%s127 + $0x78] sm:$0xff]
    %v144 = vrot.slane %v62, 7
    %v145 = vrot.slane %v63, 7
    %v146 = vrot.slane %v64, 7
    %v147 = vrot.slane %v65, 7
    %vm148 = vcmp.lt.s32.totalorder %v67, 1
    %v149 = vsel %vm148, %v146, %v147
    %v150 = vsel %vm148, %v145, %v146
    %v151 = vsel %vm148, %v144, %v145
    %v152 = vsel %vm148, %v147, %v144
    %v153 = vsel %vm119, %v152, 0.0
    %v154 = vsel %vm120, %v151, 0.0
    %v155 = vsel %vm121, %v150, 0.0
    %v156 = vsel %vm122, %v149, 0.0
    %v157 = vld [vmem:[#allocation5] sm:$0xff]
    %v158 = vld [vmem:[#allocation5 + $0x8] sm:$0xff]
    %v159 = vld [vmem:[#allocation5 + $0x10] sm:$0xff]
    %v160 = vld [vmem:[#allocation5 + $0x18] sm:$0xff]
    %v161 = vld [vmem:[#allocation5 + $0x20] sm:$0xff]
    %v162 = vld [vmem:[#allocation5 + $0x28] sm:$0xff]
    %v163 = vld [vmem:[#allocation5 + $0x30] sm:$0xff]
    %v164 = vld [vmem:[#allocation5 + $0x38] sm:$0xff]
    %v165 = vld [vmem:[#allocation5 + $0x40] sm:$0xff]
    %v166 = vld [vmem:[#allocation5 + $0x48] sm:$0xff]
    %v167 = vld [vmem:[#allocation5 + $0x50] sm:$0xff]
    %v168 = vld [vmem:[#allocation5 + $0x58] sm:$0xff]
    %v169 = vld [vmem:[#allocation5 + $0x60] sm:$0xff]
    %v170 = vld [vmem:[#allocation5 + $0x68] sm:$0xff]
    %v171 = vld [vmem:[#allocation5 + $0x70] sm:$0xff]
    %v172 = vld [vmem:[#allocation5 + $0x78] sm:$0xff]
    %173 = vmatprep.subr.mxu0 0.0
    %174 = vmatpush1.msra.mxu0 %v157
    %175 = vmatprep.subr.mxu0 0.0
    %176 = vmatpush1.msra.mxu0 %v158
    %177 = vmatprep.subr.mxu0 0.0
    %178 = vmatpush1.msra.mxu0 %v159
    %179 = vmatprep.subr.mxu0 0.0
    %180 = vmatpush1.msra.mxu0 %v160
    %181 = vmatprep.subr.mxu0 0.0
    %182 = vmatpush1.msra.mxu0 %v161
    %183 = vmatprep.subr.mxu0 0.0
    %184 = vmatpush1.msra.mxu0 %v162
    %185 = vmatprep.subr.mxu0 0.0
    %186 = vmatpush1.msra.mxu0 %v163
    %187 = vmatprep.subr.mxu0 0.0
    %188 = vmatpush1.msra.mxu0 %v164
    %189 = vmatprep.subr.mxu0 0.0
    %190 = vmatpush1.msra.mxu0 %v165
    %191 = vmatprep.subr.mxu0 0.0
    %192 = vmatpush1.msra.mxu0 %v166
    %193 = vmatprep.subr.mxu0 0.0
    %194 = vmatpush1.msra.mxu0 %v167
    %195 = vmatprep.subr.mxu0 0.0
    %196 = vmatpush1.msra.mxu0 %v168
    %197 = vmatprep.subr.mxu0 0.0
    %198 = vmatpush1.msra.mxu0 %v169
    %199 = vmatprep.subr.mxu0 0.0
    %200 = vmatpush1.msra.mxu0 %v170
    %201 = vmatprep.subr.mxu0 0.0
    %202 = vmatpush1.msra.mxu0 %v171
    %203 = vmatprep.subr.mxu0 0.0
    %204 = vmatpush1.msra.mxu0 %v172
    %205 = vmatprep.subr.mxu0 0.0
    %206 = vmatpush1.msra.mxu0 0.0
    %207 = vmatprep.subr.mxu0 0.0
    %208 = vmatpush1.msra.mxu0 0.0
    %209 = vmatprep.subr.mxu0 0.0
    %210 = vmatpush1.msra.mxu0 0.0
    %211 = vmatprep.subr.mxu0 0.0
    %212 = vmatpush1.msra.mxu0 0.0
    %213 = vmatprep.subr.mxu0 0.0
    %214 = vmatpush1.msra.mxu0 0.0
    %215 = vmatprep.subr.mxu0 0.0
    %216 = vmatpush1.msra.mxu0 0.0
    %217 = vmatprep.subr.mxu0 0.0
    %218 = vmatpush1.msra.mxu0 0.0
    %219 = vmatprep.subr.mxu0 0.0
    %220 = vmatpush1.msra.mxu0 0.0
    %221 = vmatprep.subr.mxu0 0.0
    %222 = vmatpush1.msra.mxu0 0.0
    %223 = vmatprep.subr.mxu0 0.0
    %224 = vmatpush1.msra.mxu0 0.0
    %225 = vmatprep.subr.mxu0 0.0
    %226 = vmatpush1.msra.mxu0 0.0
    %227 = vmatprep.subr.mxu0 0.0
    %228 = vmatpush1.msra.mxu0 0.0
    %229 = vmatprep.subr.mxu0 0.0
    %230 = vmatpush1.msra.mxu0 0.0
    %231 = vmatprep.subr.mxu0 0.0
    %232 = vmatpush1.msra.mxu0 0.0
    %233 = vmatprep.subr.mxu0 0.0
    %234 = vmatpush1.msra.mxu0 0.0
    %235 = vmatprep.subr.mxu0 0.0
    %236 = vmatpush1.msra.mxu0 0.0
    %237 = vmatprep.mubr.f32.mxu0 0.0
    %238 = vmatmul.mubr.f32.gmra.mrb[0].mxu0 %v153
    %v239 = vpop.f32.mrb[0].mxu0
    %v240 = vadd.f32 0.0, %v239
    %v241 = vpop.f32.mrb[0].mxu0
    %242 = vmatprep.mubr.f32.mxu0 0.0
    %243 = vmatmul.mubr.f32.gmra.mrb[0].mxu0 %v154
    %v244 = vpop.f32.mrb[0].mxu0
    %v245 = vadd.f32 0.0, %v244
    %v246 = vpop.f32.mrb[0].mxu0
    %247 = vmatprep.mubr.f32.mxu0 0.0
    %248 = vmatmul.mubr.f32.gmra.mrb[0].mxu0 %v155
    %v249 = vpop.f32.mrb[0].mxu0
    %v250 = vadd.f32 0.0, %v249
    %v251 = vpop.f32.mrb[0].mxu0
    %252 = vmatprep.mubr.f32.mxu0 0.0
    %253 = vmatmul.mubr.f32.gmra.mrb[0].mxu0 %v156
    %v254 = vpop.f32.mrb[0].mxu0
    %v255 = vadd.f32 0.0, %v254
    %v256 = vpop.f32.mrb[0].mxu0
    %257 = vdwg.mxu0
    %258 = vmatprep.subr.mxu0 0.0
    %259 = vmatpush1.msra.mxu0 %v128
    %260 = vmatprep.subr.mxu0 0.0
    %261 = vmatpush1.msra.mxu0 %v129
    %262 = vmatprep.subr.mxu0 0.0
    %263 = vmatpush1.msra.mxu0 %v130
    %264 = vmatprep.subr.mxu0 0.0
    %265 = vmatpush1.msra.mxu0 %v131
    %266 = vmatprep.subr.mxu0 0.0
    %267 = vmatpush1.msra.mxu0 %v132
    %268 = vmatprep.subr.mxu0 0.0
    %269 = vmatpush1.msra.mxu0 %v133
    %270 = vmatprep.subr.mxu0 0.0
    %271 = vmatpush1.msra.mxu0 %v134
    %272 = vmatprep.subr.mxu0 0.0
    %273 = vmatpush1.msra.mxu0 %v135
    %274 = vmatprep.subr.mxu0 0.0
    %275 = vmatpush1.msra.mxu0 %v136
    %276 = vmatprep.subr.mxu0 0.0
    %277 = vmatpush1.msra.mxu0 %v137
    %278 = vmatprep.subr.mxu0 0.0
    %279 = vmatpush1.msra.mxu0 %v138
    %280 = vmatprep.subr.mxu0 0.0
    %281 = vmatpush1.msra.mxu0 %v139
    %282 = vmatprep.subr.mxu0 0.0
    %283 = vmatpush1.msra.mxu0 %v140
    %284 = vmatprep.subr.mxu0 0.0
    %285 = vmatpush1.msra.mxu0 %v141
    %286 = vmatprep.subr.mxu0 0.0
    %287 = vmatpush1.msra.mxu0 %v142
    %288 = vmatprep.subr.mxu0 0.0
    %289 = vmatpush1.msra.mxu0 %v143
    %290 = vmatprep.subr.mxu0 0.0
    %291 = vmatpush1.msra.mxu0 0.0
    %292 = vmatprep.subr.mxu0 0.0
    %293 = vmatpush1.msra.mxu0 0.0
    %294 = vmatprep.subr.mxu0 0.0
    %295 = vmatpush1.msra.mxu0 0.0
    %296 = vmatprep.subr.mxu0 0.0
    %297 = vmatpush1.msra.mxu0 0.0
    %298 = vmatprep.subr.mxu0 0.0
    %299 = vmatpush1.msra.mxu0 0.0
    %300 = vmatprep.subr.mxu0 0.0
    %301 = vmatpush1.msra.mxu0 0.0
    %302 = vmatprep.subr.mxu0 0.0
    %303 = vmatpush1.msra.mxu0 0.0
    %304 = vmatprep.subr.mxu0 0.0
    %305 = vmatpush1.msra.mxu0 0.0
    %306 = vmatprep.subr.mxu0 0.0
    %307 = vmatpush1.msra.mxu0 0.0
    %308 = vmatprep.subr.mxu0 0.0
    %309 = vmatpush1.msra.mxu0 0.0
    %310 = vmatprep.subr.mxu0 0.0
    %311 = vmatpush1.msra.mxu0 0.0
    %312 = vmatprep.subr.mxu0 0.0
    %313 = vmatpush1.msra.mxu0 0.0
    %314 = vmatprep.subr.mxu0 0.0
    %315 = vmatpush1.msra.mxu0 0.0
    %316 = vmatprep.subr.mxu0 0.0
    %317 = vmatpush1.msra.mxu0 0.0
    %318 = vmatprep.subr.mxu0 0.0
    %319 = vmatpush1.msra.mxu0 0.0
    %320 = vmatprep.subr.mxu0 0.0
    %321 = vmatpush1.msra.mxu0 0.0
    %322 = vmatprep.mubr.f32.mxu0 0.0
    %323 = vmatmul.mubr.f32.gmra.mrb[0].mxu0 %v62
    %v324 = vpop.f32.mrb[0].mxu0
    %v325 = vadd.f32 %v240, %v324
    %v326 = vpop.f32.mrb[0].mxu0
    %327 = vmatprep.mubr.f32.mxu0 0.0
    %328 = vmatmul.mubr.f32.gmra.mrb[0].mxu0 %v63
    %v329 = vpop.f32.mrb[0].mxu0
    %v330 = vadd.f32 %v245, %v329
    %v331 = vpop.f32.mrb[0].mxu0
    %332 = vmatprep.mubr.f32.mxu0 0.0
    %333 = vmatmul.mubr.f32.gmra.mrb[0].mxu0 %v64
    %v334 = vpop.f32.mrb[0].mxu0
    %v335 = vadd.f32 %v250, %v334
    %v336 = vpop.f32.mrb[0].mxu0
    %337 = vmatprep.mubr.f32.mxu0 0.0
    %338 = vmatmul.mubr.f32.gmra.mrb[0].mxu0 %v65
    %v339 = vpop.f32.mrb[0].mxu0
    %v340 = vadd.f32 %v255, %v339
    %v341 = vpop.f32.mrb[0].mxu0
    %342 = vdwg.mxu0
    %v343 = vrot.slane %v62, 1
    %v344 = vrot.slane %v63, 1
    %v345 = vrot.slane %v64, 1
    %v346 = vrot.slane %v65, 1
    %vm347 = vcmp.lt.s32.totalorder %v67, 7
    %v348 = vsel %vm347, %v345, %v346
    %v349 = vsel %vm347, %v344, %v345
    %v350 = vsel %vm347, %v343, %v344
    %v351 = vsel %vm347, %v346, %v343
    %v352 = vsel %vm123, %v350, 0.0
    %v353 = vsel %vm124, %v349, 0.0
    %v354 = vsel %vm125, %v348, 0.0
    %v355 = vsel %vm126, %v351, 0.0
    %s356 = scalar_lea.vmem [#allocation5], 256
    %v357 = vld [vmem:[%s356] sm:$0xff]
    %v358 = vld [vmem:[%s356 + $0x8] sm:$0xff]
    %v359 = vld [vmem:[%s356 + $0x10] sm:$0xff]
    %v360 = vld [vmem:[%s356 + $0x18] sm:$0xff]
    %v361 = vld [vmem:[%s356 + $0x20] sm:$0xff]
    %v362 = vld [vmem:[%s356 + $0x28] sm:$0xff]
    %v363 = vld [vmem:[%s356 + $0x30] sm:$0xff]
    %v364 = vld [vmem:[%s356 + $0x38] sm:$0xff]
    %v365 = vld [vmem:[%s356 + $0x40] sm:$0xff]
    %v366 = vld [vmem:[%s356 + $0x48] sm:$0xff]
    %v367 = vld [vmem:[%s356 + $0x50] sm:$0xff]
    %v368 = vld [vmem:[%s356 + $0x58] sm:$0xff]
    %v369 = vld [vmem:[%s356 + $0x60] sm:$0xff]
    %v370 = vld [vmem:[%s356 + $0x68] sm:$0xff]
    %v371 = vld [vmem:[%s356 + $0x70] sm:$0xff]
    %v372 = vld [vmem:[%s356 + $0x78] sm:$0xff]
    %373 = vmatprep.subr.mxu0 0.0
    %374 = vmatpush1.msra.mxu0 %v357
    %375 = vmatprep.subr.mxu0 0.0
    %376 = vmatpush1.msra.mxu0 %v358
    %377 = vmatprep.subr.mxu0 0.0
    %378 = vmatpush1.msra.mxu0 %v359
    %379 = vmatprep.subr.mxu0 0.0
    %380 = vmatpush1.msra.mxu0 %v360
    %381 = vmatprep.subr.mxu0 0.0
    %382 = vmatpush1.msra.mxu0 %v361
    %383 = vmatprep.subr.mxu0 0.0
    %384 = vmatpush1.msra.mxu0 %v362
    %385 = vmatprep.subr.mxu0 0.0
    %386 = vmatpush1.msra.mxu0 %v363
    %387 = vmatprep.subr.mxu0 0.0
    %388 = vmatpush1.msra.mxu0 %v364
    %389 = vmatprep.subr.mxu0 0.0
    %390 = vmatpush1.msra.mxu0 %v365
    %391 = vmatprep.subr.mxu0 0.0
    %392 = vmatpush1.msra.mxu0 %v366
    %393 = vmatprep.subr.mxu0 0.0
    %394 = vmatpush1.msra.mxu0 %v367
    %395 = vmatprep.subr.mxu0 0.0
    %396 = vmatpush1.msra.mxu0 %v368
    %397 = vmatprep.subr.mxu0 0.0
    %398 = vmatpush1.msra.mxu0 %v369
    %399 = vmatprep.subr.mxu0 0.0
    %400 = vmatpush1.msra.mxu0 %v370
    %401 = vmatprep.subr.mxu0 0.0
    %402 = vmatpush1.msra.mxu0 %v371
    %403 = vmatprep.subr.mxu0 0.0
    %404 = vmatpush1.msra.mxu0 %v372
    %405 = vmatprep.subr.mxu0 0.0
    %406 = vmatpush1.msra.mxu0 0.0
    %407 = vmatprep.subr.mxu0 0.0
    %408 = vmatpush1.msra.mxu0 0.0
    %409 = vmatprep.subr.mxu0 0.0
    %410 = vmatpush1.msra.mxu0 0.0
    %411 = vmatprep.subr.mxu0 0.0
    %412 = vmatpush1.msra.mxu0 0.0
    %413 = vmatprep.subr.mxu0 0.0
    %414 = vmatpush1.msra.mxu0 0.0
    %415 = vmatprep.subr.mxu0 0.0
    %416 = vmatpush1.msra.mxu0 0.0
    %417 = vmatprep.subr.mxu0 0.0
    %418 = vmatpush1.msra.mxu0 0.0
    %419 = vmatprep.subr.mxu0 0.0
    %420 = vmatpush1.msra.mxu0 0.0
    %421 = vmatprep.subr.mxu0 0.0
    %422 = vmatpush1.msra.mxu0 0.0
    %423 = vmatprep.subr.mxu0 0.0
    %424 = vmatpush1.msra.mxu0 0.0
    %425 = vmatprep.subr.mxu0 0.0
    %426 = vmatpush1.msra.mxu0 0.0
    %427 = vmatprep.subr.mxu0 0.0
    %428 = vmatpush1.msra.mxu0 0.0
    %429 = vmatprep.subr.mxu0 0.0
    %430 = vmatpush1.msra.mxu0 0.0
    %431 = vmatprep.subr.mxu0 0.0
    %432 = vmatpush1.msra.mxu0 0.0
    %433 = vmatprep.subr.mxu0 0.0
    %434 = vmatpush1.msra.mxu0 0.0
    %435 = vmatprep.subr.mxu0 0.0
    %436 = vmatpush1.msra.mxu0 0.0
    %437 = vmatprep.mubr.f32.mxu0 0.0
    %438 = vmatmul.mubr.f32.gmra.mrb[0].mxu0 %v352
    %v439 = vpop.f32.mrb[0].mxu0
    %v440 = vadd.f32 0.0, %v439
    %v441 = vpop.f32.mrb[0].mxu0
    %442 = vmatprep.mubr.f32.mxu0 0.0
    %443 = vmatmul.mubr.f32.gmra.mrb[0].mxu0 %v353
    %v444 = vpop.f32.mrb[0].mxu0
    %v445 = vadd.f32 0.0, %v444
    %v446 = vpop.f32.mrb[0].mxu0
    %447 = vmatprep.mubr.f32.mxu0 0.0
    %448 = vmatmul.mubr.f32.gmra.mrb[0].mxu0 %v354
    %v449 = vpop.f32.mrb[0].mxu0
    %v450 = vadd.f32 0.0, %v449
    %v451 = vpop.f32.mrb[0].mxu0
    %452 = vmatprep.mubr.f32.mxu0 0.0
    %453 = vmatmul.mubr.f32.gmra.mrb[0].mxu0 %v355
    %v454 = vpop.f32.mrb[0].mxu0
    %v455 = vadd.f32 0.0, %v454
    %v456 = vpop.f32.mrb[0].mxu0
    %457 = vdwg.mxu0
    %v458 = vadd.f32 %v325, %v440
    %v459 = vadd.f32 %v330, %v445
    %v460 = vadd.f32 %v335, %v450
    %v461 = vadd.f32 %v340, %v455
    %v462 = vld [vmem:[%s2] sm:$0x1]
    %v464 = vlaneseq
    %v465 = vshrl.u32 %v464, 7
    %v466 = vsub.s32 0, %v465
    %v467 = vrot.slane %v462, %v466
    %v469 = vadd.f32 %v458, %v467
    %v470 = vadd.f32 %v459, %v467
    %v471 = vadd.f32 %v460, %v467
    %v472 = vadd.f32 %v461, %v467
    %vm473 = vcmp.gt.f32.partialorder %v469, 0.0
    %vm474 = vcmp.gt.f32.partialorder %v470, 0.0
    %vm475 = vcmp.gt.f32.partialorder %v471, 0.0
    %vm476 = vcmp.gt.f32.partialorder %v472, 0.0
    %v477 = vmul.f32 %v469, 0.2
    %v478 = vmul.f32 %v470, 0.2
    %v479 = vmul.f32 %v471, 0.2
    %v480 = vmul.f32 %v472, 0.2
    %v481 = vsel %vm473, %v469, %v477
    %v482 = vsel %vm474, %v470, %v478
    %v483 = vsel %vm475, %v471, %v479
    %v484 = vsel %vm476, %v472, %v480
    %s485 = scalar_lea.vmem [#allocation7], 128
    %v486 = vld [vmem:[%s485] sm:$0xff]
    %v487 = vld [vmem:[%s485 + $0x8] sm:$0xff]
    %v488 = vld [vmem:[%s485 + $0x10] sm:$0xff]
    %v489 = vld [vmem:[%s485 + $0x18] sm:$0xff]
    %v490 = vld [vmem:[%s485 + $0x20] sm:$0xff]
    %v491 = vld [vmem:[%s485 + $0x28] sm:$0xff]
    %v492 = vld [vmem:[%s485 + $0x30] sm:$0xff]
    %v493 = vld [vmem:[%s485 + $0x38] sm:$0xff]
    %v494 = vld [vmem:[%s485 + $0x40] sm:$0xff]
    %v495 = vld [vmem:[%s485 + $0x48] sm:$0xff]
    %v496 = vld [vmem:[%s485 + $0x50] sm:$0xff]
    %v497 = vld [vmem:[%s485 + $0x58] sm:$0xff]
    %v498 = vld [vmem:[%s485 + $0x60] sm:$0xff]
    %v499 = vld [vmem:[%s485 + $0x68] sm:$0xff]
    %v500 = vld [vmem:[%s485 + $0x70] sm:$0xff]
    %v501 = vld [vmem:[%s485 + $0x78] sm:$0xff]
    %v502 = vrot.slane %v481, 7
    %v503 = vrot.slane %v482, 7
    %v504 = vrot.slane %v483, 7
    %v505 = vrot.slane %v484, 7
    %v506 = vsel %vm148, %v504, %v505
    %v507 = vsel %vm148, %v503, %v504
    %v508 = vsel %vm148, %v502, %v503
    %v509 = vsel %vm148, %v505, %v502
    %v510 = vsel %vm119, %v509, 0.0
    %v511 = vsel %vm120, %v508, 0.0
    %v512 = vsel %vm121, %v507, 0.0
    %v513 = vsel %vm122, %v506, 0.0
    %v514 = vld [vmem:[#allocation7] sm:$0xff]
    %v515 = vld [vmem:[#allocation7 + $0x8] sm:$0xff]
    %v516 = vld [vmem:[#allocation7 + $0x10] sm:$0xff]
    %v517 = vld [vmem:[#allocation7 + $0x18] sm:$0xff]
    %v518 = vld [vmem:[#allocation7 + $0x20] sm:$0xff]
    %v519 = vld [vmem:[#allocation7 + $0x28] sm:$0xff]
    %v520 = vld [vmem:[#allocation7 + $0x30] sm:$0xff]
    %v521 = vld [vmem:[#allocation7 + $0x38] sm:$0xff]
    %v522 = vld [vmem:[#allocation7 + $0x40] sm:$0xff]
    %v523 = vld [vmem:[#allocation7 + $0x48] sm:$0xff]
    %v524 = vld [vmem:[#allocation7 + $0x50] sm:$0xff]
    %v525 = vld [vmem:[#allocation7 + $0x58] sm:$0xff]
    %v526 = vld [vmem:[#allocation7 + $0x60] sm:$0xff]
    %v527 = vld [vmem:[#allocation7 + $0x68] sm:$0xff]
    %v528 = vld [vmem:[#allocation7 + $0x70] sm:$0xff]
    %v529 = vld [vmem:[#allocation7 + $0x78] sm:$0xff]
    %530 = vmatprep.subr.mxu0 0.0
    %531 = vmatpush1.msra.mxu0 %v514
    %532 = vmatprep.subr.mxu0 0.0
    %533 = vmatpush1.msra.mxu0 %v515
    %534 = vmatprep.subr.mxu0 0.0
    %535 = vmatpush1.msra.mxu0 %v516
    %536 = vmatprep.subr.mxu0 0.0
    %537 = vmatpush1.msra.mxu0 %v517
    %538 = vmatprep.subr.mxu0 0.0
    %539 = vmatpush1.msra.mxu0 %v518
    %540 = vmatprep.subr.mxu0 0.0
    %541 = vmatpush1.msra.mxu0 %v519
    %542 = vmatprep.subr.mxu0 0.0
    %543 = vmatpush1.msra.mxu0 %v520
    %544 = vmatprep.subr.mxu0 0.0
    %545 = vmatpush1.msra.mxu0 %v521
    %546 = vmatprep.subr.mxu0 0.0
    %547 = vmatpush1.msra.mxu0 %v522
    %548 = vmatprep.subr.mxu0 0.0
    %549 = vmatpush1.msra.mxu0 %v523
    %550 = vmatprep.subr.mxu0 0.0
    %551 = vmatpush1.msra.mxu0 %v524
    %552 = vmatprep.subr.mxu0 0.0
    %553 = vmatpush1.msra.mxu0 %v525
    %554 = vmatprep.subr.mxu0 0.0
    %555 = vmatpush1.msra.mxu0 %v526
    %556 = vmatprep.subr.mxu0 0.0
    %557 = vmatpush1.msra.mxu0 %v527
    %558 = vmatprep.subr.mxu0 0.0
    %559 = vmatpush1.msra.mxu0 %v528
    %560 = vmatprep.subr.mxu0 0.0
    %561 = vmatpush1.msra.mxu0 %v529
    %562 = vmatprep.subr.mxu0 0.0
    %563 = vmatpush1.msra.mxu0 0.0
    %564 = vmatprep.subr.mxu0 0.0
    %565 = vmatpush1.msra.mxu0 0.0
    %566 = vmatprep.subr.mxu0 0.0
    %567 = vmatpush1.msra.mxu0 0.0
    %568 = vmatprep.subr.mxu0 0.0
    %569 = vmatpush1.msra.mxu0 0.0
    %570 = vmatprep.subr.mxu0 0.0
    %571 = vmatpush1.msra.mxu0 0.0
    %572 = vmatprep.subr.mxu0 0.0
    %573 = vmatpush1.msra.mxu0 0.0
    %574 = vmatprep.subr.mxu0 0.0
    %575 = vmatpush1.msra.mxu0 0.0
    %576 = vmatprep.subr.mxu0 0.0
    %577 = vmatpush1.msra.mxu0 0.0
    %578 = vmatprep.subr.mxu0 0.0
    %579 = vmatpush1.msra.mxu0 0.0
    %580 = vmatprep.subr.mxu0 0.0
    %581 = vmatpush1.msra.mxu0 0.0
    %582 = vmatprep.subr.mxu0 0.0
    %583 = vmatpush1.msra.mxu0 0.0
    %584 = vmatprep.subr.mxu0 0.0
    %585 = vmatpush1.msra.mxu0 0.0
    %586 = vmatprep.subr.mxu0 0.0
    %587 = vmatpush1.msra.mxu0 0.0
    %588 = vmatprep.subr.mxu0 0.0
    %589 = vmatpush1.msra.mxu0 0.0
    %590 = vmatprep.subr.mxu0 0.0
    %591 = vmatpush1.msra.mxu0 0.0
    %592 = vmatprep.subr.mxu0 0.0
    %593 = vmatpush1.msra.mxu0 0.0
    %594 = vmatprep.mubr.f32.mxu0 0.0
    %595 = vmatmul.mubr.f32.gmra.mrb[0].mxu0 %v510
    %v596 = vpop.f32.mrb[0].mxu0
    %v597 = vadd.f32 0.0, %v596
    %v598 = vpop.f32.mrb[0].mxu0
    %599 = vmatprep.mubr.f32.mxu0 0.0
    %600 = vmatmul.mubr.f32.gmra.mrb[0].mxu0 %v511
    %v601 = vpop.f32.mrb[0].mxu0
    %v602 = vadd.f32 0.0, %v601
    %v603 = vpop.f32.mrb[0].mxu0
    %604 = vmatprep.mubr.f32.mxu0 0.0
    %605 = vmatmul.mubr.f32.gmra.mrb[0].mxu0 %v512
    %v606 = vpop.f32.mrb[0].mxu0
    %v607 = vadd.f32 0.0, %v606
    %v608 = vpop.f32.mrb[0].mxu0
    %609 = vmatprep.mubr.f32.mxu0 0.0
    %610 = vmatmul.mubr.f32.gmra.mrb[0].mxu0 %v513
    %v611 = vpop.f32.mrb[0].mxu0
    %v612 = vadd.f32 0.0, %v611
    %v613 = vpop.f32.mrb[0].mxu0
    %614 = vdwg.mxu0
    %615 = vmatprep.subr.mxu0 0.0
    %616 = vmatpush1.msra.mxu0 %v486
    %617 = vmatprep.subr.mxu0 0.0
    %618 = vmatpush1.msra.mxu0 %v487
    %619 = vmatprep.subr.mxu0 0.0
    %620 = vmatpush1.msra.mxu0 %v488
    %621 = vmatprep.subr.mxu0 0.0
    %622 = vmatpush1.msra.mxu0 %v489
    %623 = vmatprep.subr.mxu0 0.0
    %624 = vmatpush1.msra.mxu0 %v490
    %625 = vmatprep.subr.mxu0 0.0
    %626 = vmatpush1.msra.mxu0 %v491
    %627 = vmatprep.subr.mxu0 0.0
    %628 = vmatpush1.msra.mxu0 %v492
    %629 = vmatprep.subr.mxu0 0.0
    %630 = vmatpush1.msra.mxu0 %v493
    %631 = vmatprep.subr.mxu0 0.0
    %632 = vmatpush1.msra.mxu0 %v494
    %633 = vmatprep.subr.mxu0 0.0
    %634 = vmatpush1.msra.mxu0 %v495
    %635 = vmatprep.subr.mxu0 0.0
    %636 = vmatpush1.msra.mxu0 %v496
    %637 = vmatprep.subr.mxu0 0.0
    %638 = vmatpush1.msra.mxu0 %v497
    %639 = vmatprep.subr.mxu0 0.0
    %640 = vmatpush1.msra.mxu0 %v498
    %641 = vmatprep.subr.mxu0 0.0
    %642 = vmatpush1.msra.mxu0 %v499
    %643 = vmatprep.subr.mxu0 0.0
    %644 = vmatpush1.msra.mxu0 %v500
    %645 = vmatprep.subr.mxu0 0.0
    %646 = vmatpush1.msra.mxu0 %v501
    %647 = vmatprep.subr.mxu0 0.0
    %648 = vmatpush1.msra.mxu0 0.0
    %649 = vmatprep.subr.mxu0 0.0
    %650 = vmatpush1.msra.mxu0 0.0
    %651 = vmatprep.subr.mxu0 0.0
    %652 = vmatpush1.msra.mxu0 0.0
    %653 = vmatprep.subr.mxu0 0.0
    %654 = vmatpush1.msra.mxu0 0.0
    %655 = vmatprep.subr.mxu0 0.0
    %656 = vmatpush1.msra.mxu0 0.0
    %657 = vmatprep.subr.mxu0 0.0
    %658 = vmatpush1.msra.mxu0 0.0
    %659 = vmatprep.subr.mxu0 0.0
    %660 = vmatpush1.msra.mxu0 0.0
    %661 = vmatprep.subr.mxu0 0.0
    %662 = vmatpush1.msra.mxu0 0.0
    %663 = vmatprep.subr.mxu0 0.0
    %664 = vmatpush1.msra.mxu0 0.0
    %665 = vmatprep.subr.mxu0 0.0
    %666 = vmatpush1.msra.mxu0 0.0
    %667 = vmatprep.subr.mxu0 0.0
    %668 = vmatpush1.msra.mxu0 0.0
    %669 = vmatprep.subr.mxu0 0.0
    %670 = vmatpush1.msra.mxu0 0.0
    %671 = vmatprep.subr.mxu0 0.0
    %672 = vmatpush1.msra.mxu0 0.0
    %673 = vmatprep.subr.mxu0 0.0
    %674 = vmatpush1.msra.mxu0 0.0
    %675 = vmatprep.subr.mxu0 0.0
    %676 = vmatpush1.msra.mxu0 0.0
    %677 = vmatprep.subr.mxu0 0.0
    %678 = vmatpush1.msra.mxu0 0.0
    %679 = vmatprep.mubr.f32.mxu0 0.0
    %680 = vmatmul.mubr.f32.gmra.mrb[0].mxu0 %v481
    %v681 = vpop.f32.mrb[0].mxu0
    %v682 = vadd.f32 %v597, %v681
    %v683 = vpop.f32.mrb[0].mxu0
    %684 = vmatprep.mubr.f32.mxu0 0.0
    %685 = vmatmul.mubr.f32.gmra.mrb[0].mxu0 %v482
    %v686 = vpop.f32.mrb[0].mxu0
    %v687 = vadd.f32 %v602, %v686
    %v688 = vpop.f32.mrb[0].mxu0
    %689 = vmatprep.mubr.f32.mxu0 0.0
    %690 = vmatmul.mubr.f32.gmra.mrb[0].mxu0 %v483
    %v691 = vpop.f32.mrb[0].mxu0
    %v692 = vadd.f32 %v607, %v691
    %v693 = vpop.f32.mrb[0].mxu0
    %694 = vmatprep.mubr.f32.mxu0 0.0
    %695 = vmatmul.mubr.f32.gmra.mrb[0].mxu0 %v484
    %v696 = vpop.f32.mrb[0].mxu0
    %v697 = vadd.f32 %v612, %v696
    %v698 = vpop.f32.mrb[0].mxu0
    %699 = vdwg.mxu0
    %v700 = vrot.slane %v481, 1
    %v701 = vrot.slane %v482, 1
    %v702 = vrot.slane %v483, 1
    %v703 = vrot.slane %v484, 1
    %v704 = vsel %vm347, %v702, %v703
    %v705 = vsel %vm347, %v701, %v702
    %v706 = vsel %vm347, %v700, %v701
    %v707 = vsel %vm347, %v703, %v700
    %v708 = vsel %vm123, %v706, 0.0
    %v709 = vsel %vm124, %v705, 0.0
    %v710 = vsel %vm125, %v704, 0.0
    %v711 = vsel %vm126, %v707, 0.0
    %s712 = scalar_lea.vmem [#allocation7], 256
    %v713 = vld [vmem:[%s712] sm:$0xff]
    %v714 = vld [vmem:[%s712 + $0x8] sm:$0xff]
    %v715 = vld [vmem:[%s712 + $0x10] sm:$0xff]
    %v716 = vld [vmem:[%s712 + $0x18] sm:$0xff]
    %v717 = vld [vmem:[%s712 + $0x20] sm:$0xff]
    %v718 = vld [vmem:[%s712 + $0x28] sm:$0xff]
    %v719 = vld [vmem:[%s712 + $0x30] sm:$0xff]
    %v720 = vld [vmem:[%s712 + $0x38] sm:$0xff]
    %v721 = vld [vmem:[%s712 + $0x40] sm:$0xff]
    %v722 = vld [vmem:[%s712 + $0x48] sm:$0xff]
    %v723 = vld [vmem:[%s712 + $0x50] sm:$0xff]
    %v724 = vld [vmem:[%s712 + $0x58] sm:$0xff]
    %v725 = vld [vmem:[%s712 + $0x60] sm:$0xff]
    %v726 = vld [vmem:[%s712 + $0x68] sm:$0xff]
    %v727 = vld [vmem:[%s712 + $0x70] sm:$0xff]
    %v728 = vld [vmem:[%s712 + $0x78] sm:$0xff]
    %729 = vmatprep.subr.mxu0 0.0
    %730 = vmatpush1.msra.mxu0 %v713
    %731 = vmatprep.subr.mxu0 0.0
    %732 = vmatpush1.msra.mxu0 %v714
    %733 = vmatprep.subr.mxu0 0.0
    %734 = vmatpush1.msra.mxu0 %v715
    %735 = vmatprep.subr.mxu0 0.0
    %736 = vmatpush1.msra.mxu0 %v716
    %737 = vmatprep.subr.mxu0 0.0
    %738 = vmatpush1.msra.mxu0 %v717
    %739 = vmatprep.subr.mxu0 0.0
    %740 = vmatpush1.msra.mxu0 %v718
    %741 = vmatprep.subr.mxu0 0.0
    %742 = vmatpush1.msra.mxu0 %v719
    %743 = vmatprep.subr.mxu0 0.0
    %744 = vmatpush1.msra.mxu0 %v720
    %745 = vmatprep.subr.mxu0 0.0
    %746 = vmatpush1.msra.mxu0 %v721
    %747 = vmatprep.subr.mxu0 0.0
    %748 = vmatpush1.msra.mxu0 %v722
    %749 = vmatprep.subr.mxu0 0.0
    %750 = vmatpush1.msra.mxu0 %v723
    %751 = vmatprep.subr.mxu0 0.0
    %752 = vmatpush1.msra.mxu0 %v724
    %753 = vmatprep.subr.mxu0 0.0
    %754 = vmatpush1.msra.mxu0 %v725
    %755 = vmatprep.subr.mxu0 0.0
    %756 = vmatpush1.msra.mxu0 %v726
    %757 = vmatprep.subr.mxu0 0.0
    %758 = vmatpush1.msra.mxu0 %v727
    %759 = vmatprep.subr.mxu0 0.0
    %760 = vmatpush1.msra.mxu0 %v728
    %761 = vmatprep.subr.mxu0 0.0
    %762 = vmatpush1.msra.mxu0 0.0
    %763 = vmatprep.subr.mxu0 0.0
    %764 = vmatpush1.msra.mxu0 0.0
    %765 = vmatprep.subr.mxu0 0.0
    %766 = vmatpush1.msra.mxu0 0.0
    %767 = vmatprep.subr.mxu0 0.0
    %768 = vmatpush1.msra.mxu0 0.0
    %769 = vmatprep.subr.mxu0 0.0
    %770 = vmatpush1.msra.mxu0 0.0
    %771 = vmatprep.subr.mxu0 0.0
    %772 = vmatpush1.msra.mxu0 0.0
    %773 = vmatprep.subr.mxu0 0.0
    %774 = vmatpush1.msra.mxu0 0.0
    %775 = vmatprep.subr.mxu0 0.0
    %776 = vmatpush1.msra.mxu0 0.0
    %777 = vmatprep.subr.mxu0 0.0
    %778 = vmatpush1.msra.mxu0 0.0
    %779 = vmatprep.subr.mxu0 0.0
    %780 = vmatpush1.msra.mxu0 0.0
    %781 = vmatprep.subr.mxu0 0.0
    %782 = vmatpush1.msra.mxu0 0.0
    %783 = vmatprep.subr.mxu0 0.0
    %784 = vmatpush1.msra.mxu0 0.0
    %785 = vmatprep.subr.mxu0 0.0
    %786 = vmatpush1.msra.mxu0 0.0
    %787 = vmatprep.subr.mxu0 0.0
    %788 = vmatpush1.msra.mxu0 0.0
    %789 = vmatprep.subr.mxu0 0.0
    %790 = vmatpush1.msra.mxu0 0.0
    %791 = vmatprep.subr.mxu0 0.0
    %792 = vmatpush1.msra.mxu0 0.0
    %793 = vmatprep.mubr.f32.mxu0 0.0
    %794 = vmatmul.mubr.f32.gmra.mrb[0].mxu0 %v708
    %v795 = vpop.f32.mrb[0].mxu0
    %v796 = vadd.f32 0.0, %v795
    %v797 = vpop.f32.mrb[0].mxu0
    %798 = vmatprep.mubr.f32.mxu0 0.0
    %799 = vmatmul.mubr.f32.gmra.mrb[0].mxu0 %v709
    %v800 = vpop.f32.mrb[0].mxu0
    %v801 = vadd.f32 0.0, %v800
    %v802 = vpop.f32.mrb[0].mxu0
    %803 = vmatprep.mubr.f32.mxu0 0.0
    %804 = vmatmul.mubr.f32.gmra.mrb[0].mxu0 %v710
    %v805 = vpop.f32.mrb[0].mxu0
    %v806 = vadd.f32 0.0, %v805
    %v807 = vpop.f32.mrb[0].mxu0
    %808 = vmatprep.mubr.f32.mxu0 0.0
    %809 = vmatmul.mubr.f32.gmra.mrb[0].mxu0 %v711
    %v810 = vpop.f32.mrb[0].mxu0
    %v811 = vadd.f32 0.0, %v810
    %v812 = vpop.f32.mrb[0].mxu0
    %813 = vdwg.mxu0
    %v814 = vadd.f32 %v682, %v796
    %v815 = vadd.f32 %v687, %v801
    %v816 = vadd.f32 %v692, %v806
    %v817 = vadd.f32 %v697, %v811
    %v818 = vld [vmem:[%s4] sm:$0x1]
    %v820 = vlaneseq
    %v821 = vshrl.u32 %v820, 7
    %v822 = vsub.s32 0, %v821
    %v823 = vrot.slane %v818, %v822
    %v825 = vadd.f32 %v814, %v823
    %v826 = vadd.f32 %v815, %v823
    %v827 = vadd.f32 %v816, %v823
    %v828 = vadd.f32 %v817, %v823
    %v829 = vadd.f32 %v62, %v825
    %v830 = vadd.f32 %v63, %v826
    %v831 = vadd.f32 %v64, %v827
    %v832 = vadd.f32 %v65, %v828
    %833 = vst [vmem:[#allocation8] sm:$0xff] %v829
    %834 = vst [vmem:[#allocation8 + $0x8] sm:$0xff] %v830
    %835 = vst [vmem:[#allocation8 + $0x10] sm:$0xff] %v831
    %836 = vst [vmem:[#allocation8 + $0x18] sm:$0xff] %v832
    // Predicated region
    $region34: #{tpu_custom_call.1} parent=1 // pred_check
      _
    $region35: #{tpu_custom_call.1} parent=1 // pred_check_branch
      %838 = sbr.rel (0) target = $region37
    $region36: #{tpu_custom_call.1} parent=1 // pred_region
      %s840 = ssub.s32 512, 512
      %841 = vsyncadd [#allocation4], %s840
      %s842 = sshll.u32 [#allocation8], 4
      %s843 = int_to_ptr.vmem [resolvable:$true] %s842
      %848 = dma.vmem_to_hbm [thread:$0]  %s843, 512, %s5, [#allocation4], 128, 128, 8
    $region37: #{tpu_custom_call.1} parent=1 // pred_fallthru
      _
    // Predicated region
    $region38: #{tpu_custom_call.1} parent=1 // pred_check
      _
    $region39: #{tpu_custom_call.1} parent=1 // pred_check_branch
      %850 = sbr.rel (0) target = $region41
    $region40: #{tpu_custom_call.1} parent=1 // pred_region
      %851 = dma.done [#allocation4], 512
    $region41: #{tpu_custom_call.1} parent=1 // pred_fallthru
      _
    %852 = vsyncpa [#allocation3], 1
    %853 = vsyncpa [#allocation6], 1
    %854 = vsyncpa [#allocation4], 1

</llo_original>
